<compile_context>
chip_gen: v6e
topology: v6e:2x2x1
jax: 0.10.0
libtpu: 0.0.40
codegen_flags: <defaults>
</compile_context>

<pallas_src>
import functools

import jax
import jax.numpy as jnp
from jax import lax
from jax.experimental import pallas as pl
from jax.experimental.pallas import tpu as pltpu


# ---------------------------------------------------------------------------
# Kernels
# ---------------------------------------------------------------------------
def _masked_operands(x_ref, y_ref, k_rem):
    """Load the (tm,tk) / (tk,tn) operand blocks.

    When K is not a multiple of tk (static k_rem != 0), the last K block of x
    contains garbage columns >= k_rem and the last K block of y contains
    garbage rows >= k_rem (partial boundary-block DMA). Zero both so the
    garbage never reaches the MXU (0*garbage could be NaN if only one side
    were masked). The mask compare uses tiny (1,tk)/(tk,1) iotas and is
    negligible next to the MXU work of the block.
    """
    x = x_ref[...]
    y = y_ref[...]
    if k_rem:
        tk = x.shape[-1]
        is_last = pl.program_id(2) == pl.num_programs(2) - 1
        kk = jnp.where(is_last, k_rem, tk)
        col = lax.broadcasted_iota(jnp.int32, (1, tk), 1)
        row = lax.broadcasted_iota(jnp.int32, (y.shape[0], 1), 0)
        x = jnp.where(col < kk, x, jnp.zeros_like(x))
        y = jnp.where(row < kk, y, jnp.zeros_like(y))
    return x, y


def _mm_kernel_direct(x_ref, y_ref, o_ref, *, k_rem):
    """f32 output: accumulate straight into the resident output block."""
    @pl.when(pl.program_id(2) == 0)
    def _():
        o_ref[...] = jnp.zeros_like(o_ref)

    x, y = _masked_operands(x_ref, y_ref, k_rem)
    o_ref[...] += jnp.dot(x, y, preferred_element_type=jnp.float32)


def _mm_kernel_acc(x_ref, y_ref, o_ref, acc_ref, *, k_rem):
    """Narrow output dtypes (bf16/fp16/...): accumulate in an f32 VMEM scratch
    and cast once on the last K step."""
    @pl.when(pl.program_id(2) == 0)
    def _():
        acc_ref[...] = jnp.zeros_like(acc_ref)

    x, y = _masked_operands(x_ref, y_ref, k_rem)
    acc_ref[...] += jnp.dot(x, y, preferred_element_type=jnp.float32)

    @pl.when(pl.program_id(2) == pl.num_programs(2) - 1)
    def _():
        o_ref[...] = acc_ref[...].astype(o_ref.dtype)


# ---------------------------------------------------------------------------
# Tiling helpers
# ---------------------------------------------------------------------------
def _round_up(x, m):
    return (x + m - 1) // m * m


def _pick_tile(dim, preferred, align):
    """`preferred` for large dims; small dims get a single aligned block."""
    if dim >= preferred:
        return preferred
    return max(align, _round_up(dim, align))


def _chip_config():
    """Returns (is_v7x, big_vmem). v5e/v6e TensorCores have 128 MiB of VMEM
    (use big tiles + a high VMEM limit); v7x has 64 MiB (smaller budget) but
    two TensorCores. Unknown chips get the conservative (small) budget."""
    kind = ""
    try:
        kind = jax.devices()[0].device_kind.lower()
    except Exception:
        pass
    is_v7 = "v7" in kind
    big_vmem = (not is_v7) and (("v5" in kind) or ("v6" in kind))
    return is_v7, big_vmem


# ---------------------------------------------------------------------------
# Wrapper
# ---------------------------------------------------------------------------
def mm(x, y):
    """Pallas TPU implementation of torch.mm(x, y)."""
    assert x.ndim == 2 and y.ndim == 2, "torch.mm operates on 2-D matrices"
    M, K = x.shape
    K2, N = y.shape
    assert K == K2, "inner dimensions must match"

    out_dtype = jnp.result_type(x.dtype, y.dtype)
    # TODO(synk): integer torch.mm does exact integer accumulation; here we
    # accumulate in f32 (v7x's MXU has no integer matmul path at all).

    if M == 0 or N == 0 or K == 0:
        return jnp.zeros((M, N), out_dtype)

    is_v7, big_vmem = _chip_config()

    x_item = jnp.dtype(x.dtype).itemsize
    y_item = jnp.dtype(y.dtype).itemsize
    o_item = jnp.dtype(out_dtype).itemsize
    in_item = max(x_item, y_item)

    # --- tile selection ----------------------------------------------------
    # Big output tiles push arithmetic intensity (tm*tn/(tm+tn) FLOP/byte for
    # bf16) past the HBM ridge on every generation; 2-byte inputs get double
    # tk at the same VMEM footprint. v5e/v6e (128 MiB VMEM) take a wider tn;
    # v7x (64 MiB VMEM, 3.2 TB/s HBM) is already compute-bound at 1024 tiles.
    if in_item <= 2:
        pref_tm, pref_tn, pref_tk = (1024, 2048, 1024) if big_vmem else (1024, 1024, 1024)
    else:
        pref_tm, pref_tn, pref_tk = (1024, 1024, 512) if big_vmem else (512, 1024, 512)

    # Dtype-aware sublane alignment: sub-32-bit dtypes pack along sublanes
    # (bf16 min tile (16,128), int8/fp8 (32,128)).
    align_m = max(32 // x_item, 32 // o_item, 8)
    tm = _pick_tile(M, pref_tm, align_m)
    tn = _pick_tile(N, pref_tn, 128)
    tk = _pick_tile(K, pref_tk, 128)

    # v7x has 2 TensorCores: keep the combined extent of the two "parallel"
    # grid axes >= 2 for GEMV-like / tall-skinny shapes so neither core idles.
    if is_v7:
        while pl.cdiv(M, tm) * pl.cdiv(N, tn) < 2:
            if tn > 128 and (tn // 2) % 128 == 0 and tn >= tm:
                tn //= 2
            elif tm > align_m and (tm // 2) % align_m == 0:
                tm //= 2
            elif tn > 128 and (tn // 2) % 128 == 0:
                tn //= 2
            else:
                break

    # No full padded HBM copies of x / y (that is an extra read+write pass):
    #   * M / N tails are handled by Pallas partial boundary blocks -- edge
    #     garbage only lands in output rows/cols past M/N, which are sliced
    #     off / never written back.
    #   * the K tail is masked inside the kernel (k_rem, see _masked_operands).
    # Only dims smaller than a single tile are padded (tiny one-block case).
    Mp = M if M >= tm else tm
    Np = N if N >= tn else tn
    Kp = K if K >= tk else tk
    if (Mp, Kp) != (M, K):
        x = jnp.pad(x, ((0, Mp - M), (0, Kp - K)))
    if (Kp, Np) != (K, N):
        y = jnp.pad(y, ((0, Kp - K), (0, Np - N)))
    k_rem = Kp % tk

    # --- kernel variant ------------------------------------------------------
    if out_dtype == jnp.float32:
        kernel = functools.partial(_mm_kernel_direct, k_rem=k_rem)
        scratch_shapes = []
    else:
        kernel = functools.partial(_mm_kernel_acc, k_rem=k_rem)
        scratch_shapes = [pltpu.VMEM((tm, tn), jnp.float32)]

    grid = (pl.cdiv(Mp, tm), pl.cdiv(Np, tn), pl.cdiv(Kp, tk))

    cost = pl.CostEstimate(
        flops=2 * M * N * K,
        transcendentals=0,
        bytes_accessed=M * K * x_item + K * N * y_item + M * N * o_item,
    )

    out = pl.pallas_call(
        kernel,
        out_shape=jax.ShapeDtypeStruct((Mp, Np), out_dtype),
        grid_spec=pltpu.PrefetchScalarGridSpec(
            num_scalar_prefetch=0,
            grid=grid,
            in_specs=[
                pl.BlockSpec((tm, tk), lambda i, j, k: (i, k)),
                pl.BlockSpec((tk, tn), lambda i, j, k: (k, j)),
            ],
            out_specs=pl.BlockSpec((tm, tn), lambda i, j, k: (i, j)),
            scratch_shapes=scratch_shapes,
        ),
        compiler_params=pltpu.CompilerParams(
            dimension_semantics=("parallel", "parallel", "arbitrary"),
            # v5e/v6e: use most of the 128 MiB VMEM so the big resident output
            # tile + double-buffered inputs fit; v7x/unknown: stay well under
            # the 64 MiB physical VMEM (worst-case tiles here need ~16 MiB).
            vmem_limit_bytes=(100 << 20) if big_vmem else (48 << 20),
        ),
        cost_estimate=cost,
    )(x, y)

    if (Mp, Np) != (M, N):
        out = out[:M, :N]
    return out


# ---------------------------------------------------------------------------
# Self-test
# ---------------------------------------------------------------------------
if __name__ == "__main__":
    key = jax.random.PRNGKey(0)
    k1, k2, k3, k4, k5, k6 = jax.random.split(key, 6)

    # 1) Small f32 shape consistent with torch.mm's 2-D contract.
    M, K, N = 8, 32, 16
    x = jax.random.normal(k1, (M, K), dtype=jnp.float32)
    y = jax.random.normal(k2, (K, N), dtype=jnp.float32)
    out = jax.block_until_ready(mm(x, y))
    ref = jnp.dot(x, y, preferred_element_type=jnp.float32)
    assert out.shape == (M, N)
    assert jnp.allclose(out, ref, atol=1e-5, rtol=1e-5)

    # 2) Non-tile-divisible shape (single-tile pad path).
    M2, K2, N2 = 136, 200, 260
    x2 = jax.random.normal(k3, (M2, K2), dtype=jnp.float32)
    y2 = jax.random.normal(k4, (K2, N2), dtype=jnp.float32)
    out2 = jax.block_until_ready(mm(x2, y2))
    ref2 = jnp.dot(x2, y2, preferred_element_type=jnp.float32)
    assert out2.shape == (M2, N2)
    assert jnp.allclose(out2, ref2, atol=1e-3, rtol=1e-3)

    # 3) Ragged K > tk: exercises partial boundary blocks + in-kernel K masking.
    M3, K3, N3 = 16, 700, 136
    x3 = jax.random.normal(k5, (M3, K3), dtype=jnp.float32)
    y3 = jax.random.normal(k6, (K3, N3), dtype=jnp.float32)
    out3 = jax.block_until_ready(mm(x3, y3))
    ref3 = jnp.dot(x3, y3, preferred_element_type=jnp.float32)
    assert out3.shape == (M3, N3)
    assert jnp.allclose(out3, ref3, atol=1e-2, rtol=1e-2)

    # 4) bf16 exercises the scratch-accumulator (narrow output dtype) path.
    xb = x.astype(jnp.bfloat16)
    yb = y.astype(jnp.bfloat16)
    outb = jax.block_until_ready(mm(xb, yb))
    refb = jnp.dot(xb, yb, preferred_element_type=jnp.float32)
    assert outb.dtype == jnp.bfloat16
    assert jnp.allclose(outb.astype(jnp.float32), refb, atol=2e-1, rtol=2e-2)

    print("KERNEL_OK")
</pallas_src>

<mosaic_0001>
module attributes {stable_mosaic.version = 11 : i64} {
  func.func @_mm_kernel_direct(%arg0: i32, %arg1: i32, %arg2: i32, %arg3: memref<8x128xf32, #tpu.memory_space<vmem>>, %arg4: memref<128x128xf32, #tpu.memory_space<vmem>>, %arg5: memref<8x128xf32, #tpu.memory_space<vmem>>) attributes {dimension_semantics = [#tpu.dimension_semantics<parallel>, #tpu.dimension_semantics<parallel>, #tpu.dimension_semantics<arbitrary>], iteration_bounds = array<i64: 1, 1, 1>, scalar_prefetch = 0 : i64, scratch_operands = 0 : i64, tpu.core_type = #tpu.core_type<tc>, window_params = [{transform_indices = @transform_0, window_bounds = array<i64: 8, 128>}, {transform_indices = @transform_1, window_bounds = array<i64: 128, 128>}, {transform_indices = @transform_2, window_bounds = array<i64: 8, 128>}]} {
    %c0_i32 = arith.constant 0 : i32
    %0 = arith.cmpi eq, %arg2, %c0_i32 : i32
    %1 = arith.extui %0 : i1 to i32
    %c0_i32_0 = arith.constant 0 : i32
    %2 = arith.cmpi ne, %1, %c0_i32_0 : i32
    scf.if %2 {
      %cst_8 = arith.constant 0.000000e+00 : f32
      %9 = vector.broadcast %cst_8 : f32 to vector<8x128xf32>
      %c0_9 = arith.constant 0 : index
      %c0_10 = arith.constant 0 : index
      %10 = vector.load %arg5[%c0_9, %c0_10] : memref<8x128xf32, #tpu.memory_space<vmem>>, vector<8x128xf32>
      tpu.vector_store %arg5[%c0_9, %c0_10], %9 {strides = array<i32>} : memref<8x128xf32, #tpu.memory_space<vmem>>, vector<8x128xf32>,
    } else {
    }
    %c0 = arith.constant 0 : index
    %c0_1 = arith.constant 0 : index
    %3 = vector.load %arg3[%c0, %c0_1] : memref<8x128xf32, #tpu.memory_space<vmem>>, vector<8x128xf32>
    %c0_2 = arith.constant 0 : index
    %c0_3 = arith.constant 0 : index
    %4 = vector.load %arg4[%c0_2, %c0_3] : memref<128x128xf32, #tpu.memory_space<vmem>>, vector<128x128xf32>
    %c0_4 = arith.constant 0 : index
    %c0_5 = arith.constant 0 : index
    %5 = vector.load %arg5[%c0_4, %c0_5] : memref<8x128xf32, #tpu.memory_space<vmem>>, vector<8x128xf32>
    %cst = arith.constant dense<0.000000e+00> : vector<8x128xf32>
    %6 = tpu.matmul %3, %4, %cst {dimension_numbers = #tpu.dot_dimension_numbers<[1], [0], [0], [1], [0, 0, 1, 1], [], []>} : vector<8x128xf32>, vector<128x128xf32>, vector<8x128xf32> -> vector<8x128xf32>
    %7 = arith.addf %5, %6 : vector<8x128xf32>
    %c0_6 = arith.constant 0 : index
    %c0_7 = arith.constant 0 : index
    %8 = vector.load %arg5[%c0_6, %c0_7] : memref<8x128xf32, #tpu.memory_space<vmem>>, vector<8x128xf32>
    tpu.vector_store %arg5[%c0_6, %c0_7], %7 {strides = array<i32>} : memref<8x128xf32, #tpu.memory_space<vmem>>, vector<8x128xf32>,
    return
  }
  func.func @transform_0(%arg0: i32, %arg1: i32, %arg2: i32) -> (i32, i32) {
    %c0_i32 = arith.constant 0 : i32
    return %arg0, %arg2 : i32, i32
  }
  func.func @transform_1(%arg0: i32, %arg1: i32, %arg2: i32) -> (i32, i32) {
    %c0_i32 = arith.constant 0 : i32
    return %arg2, %arg1 : i32, i32
  }
  func.func @transform_2(%arg0: i32, %arg1: i32, %arg2: i32) -> (i32, i32) {
    %c0_i32 = arith.constant 0 : i32
    return %arg0, %arg1 : i32, i32
  }
}

</mosaic_0001>

<llo_original>
// kernel: tpu_custom_call.1
$region0: #{tpu_custom_call.1}
  #allocation0 [shape = 'u32[]', space=smem, size = 0x4, offset = 0x4, fixed_abs, tag = 'smem constant byte address 0x4 - core index']
  #allocation1 [shape = 'u32[144,128]{1,0:T(1,128)}', space=vmem, size = 0x12000, scoped, tag = 'internal scratch']
  %s0 = inlined_call_operand.hbm [shape: f32[8,128], index: 0, kind: input, shape index: {}]
  %s1 = inlined_call_operand.hbm [shape: f32[128,128], index: 1, kind: input, shape index: {}]
  %s2 = inlined_call_operand.hbm [shape: f32[8,128], index: 2, kind: output, shape index: {}]
  %s3 = sld [smem:[#allocation0]]
  $region30: #{tpu_custom_call.1} parent=0
    _
  %s5 = ssub.s32 1, %s3
  %s6 = scalar_select 0, %s5, %s3
  $region1: #{tpu_custom_call.1} parent=0
    #allocation2 [shape = 'u8[4096]{0}', space=vmem, size = 0x1000, scoped, tag = 'input window, operand 0, single buffered']
    #allocation3 [shape = 's32[1]{0}', space=sflag, size = 0x4, scoped, tag = 'scoped memory for tpu_custom_call.1']
    #allocation4 [shape = 's32[1]{0}', space=sflag, size = 0x4, scoped, tag = 'scoped memory for tpu_custom_call.1']
    #allocation5 [shape = 'u8[65536]{0}', space=vmem, size = 0x10000, scoped, tag = 'input window, operand 1, single buffered']
    #allocation6 [shape = 's32[1]{0}', space=sflag, size = 0x4, scoped, tag = 'scoped memory for tpu_custom_call.1']
    #allocation7 [shape = 'u8[4096]{0}', space=vmem, size = 0x1000, scoped, tag = 'output window, operand 0, single buffered']
    %7 = vsyncpa [#allocation3], 0
    %8 = vsyncpa [#allocation6], 0
    %9 = vsyncpa [#allocation4], 0
    // Predicated region
    $region2: #{tpu_custom_call.1} parent=1 // pred_check
      _
    $region3: #{tpu_custom_call.1} parent=1 // pred_check_branch
      %11 = sbr.rel (0) target = $region5
    $region4: #{tpu_custom_call.1} parent=1 // pred_region
      %s13 = ssub.s32 128, 128
      %14 = vsyncadd [#allocation3], %s13
      %s16 = sshll.u32 [#allocation2], 4
      %s17 = int_to_ptr.vmem [resolvable:$true] %s16
      %19 = dma.hbm_to_vmem [thread:$0]  %s0, 128, %s17, [#allocation3]
    $region5: #{tpu_custom_call.1} parent=1 // pred_fallthru
      _
    // Predicated region
    $region6: #{tpu_custom_call.1} parent=1 // pred_check
      _
    $region7: #{tpu_custom_call.1} parent=1 // pred_check_branch
      %21 = sbr.rel (0) target = $region9
    $region8: #{tpu_custom_call.1} parent=1 // pred_region
      %s23 = ssub.s32 2048, 2048
      %24 = vsyncadd [#allocation6], %s23
      %s25 = sshll.u32 [#allocation5], 4
      %s26 = int_to_ptr.vmem [resolvable:$true] %s25
      %31 = dma.hbm_to_vmem [thread:$0]  %s1, 2048, %s26, [#allocation6], 128, 128, 8
    $region9: #{tpu_custom_call.1} parent=1 // pred_fallthru
      _
    // Predicated region
    $region10: #{tpu_custom_call.1} parent=1 // pred_check
      _
    $region11: #{tpu_custom_call.1} parent=1 // pred_check_branch
      %33 = sbr.rel (0) target = $region13
    $region12: #{tpu_custom_call.1} parent=1 // pred_region
      %34 = dma.done [#allocation3], 128
    $region13: #{tpu_custom_call.1} parent=1 // pred_fallthru
      _
    // Predicated region
    $region14: #{tpu_custom_call.1} parent=1 // pred_check
      _
    $region15: #{tpu_custom_call.1} parent=1 // pred_check_branch
      %36 = sbr.rel (0) target = $region17
    $region16: #{tpu_custom_call.1} parent=1 // pred_region
      %37 = dma.done [#allocation6], 2048
    $region17: #{tpu_custom_call.1} parent=1 // pred_fallthru
      _
    %p38 = scmp.eq.s32.totalorder 0, 0
    // Predicated region
    $region18: #{tpu_custom_call.1} parent=1 // pred_check
      %p39 = pneg %p38
    $region19: #{tpu_custom_call.1} parent=1 // pred_check_branch
      %41 = sbr.rel (%p39) target = $region21
    $region20: #{tpu_custom_call.1} parent=1 // pred_region
      %42 = vst [vmem:[#allocation7] sm:$0xff] 0.0
    $region21: #{tpu_custom_call.1} parent=1 // pred_fallthru
      _
    %v43 = vld [vmem:[#allocation2] sm:$0xff]
    %v44 = vld [vmem:[#allocation5] sm:$0xff]
    %v45 = vld [vmem:[#allocation5 + $0x8] sm:$0xff]
    %v46 = vld [vmem:[#allocation5 + $0x10] sm:$0xff]
    %v47 = vld [vmem:[#allocation5 + $0x18] sm:$0xff]
    %v48 = vld [vmem:[#allocation5 + $0x20] sm:$0xff]
    %v49 = vld [vmem:[#allocation5 + $0x28] sm:$0xff]
    %v50 = vld [vmem:[#allocation5 + $0x30] sm:$0xff]
    %v51 = vld [vmem:[#allocation5 + $0x38] sm:$0xff]
    %v52 = vld [vmem:[#allocation5 + $0x40] sm:$0xff]
    %v53 = vld [vmem:[#allocation5 + $0x48] sm:$0xff]
    %v54 = vld [vmem:[#allocation5 + $0x50] sm:$0xff]
    %v55 = vld [vmem:[#allocation5 + $0x58] sm:$0xff]
    %v56 = vld [vmem:[#allocation5 + $0x60] sm:$0xff]
    %v57 = vld [vmem:[#allocation5 + $0x68] sm:$0xff]
    %v58 = vld [vmem:[#allocation5 + $0x70] sm:$0xff]
    %v59 = vld [vmem:[#allocation5 + $0x78] sm:$0xff]
    %v60 = vld [vmem:[#allocation7] sm:$0xff]
    %61 = vmatprep.subr.mxu0 0.0
    %62 = vmatpush1.msra.mxu0 %v59
    %63 = vmatprep.subr.mxu0 0.0
    %64 = vmatpush1.msra.mxu0 %v58
    %65 = vmatprep.subr.mxu0 0.0
    %66 = vmatpush1.msra.mxu0 %v57
    %67 = vmatprep.subr.mxu0 0.0
    %68 = vmatpush1.msra.mxu0 %v56
    %69 = vmatprep.subr.mxu0 0.0
    %70 = vmatpush1.msra.mxu0 %v55
    %71 = vmatprep.subr.mxu0 0.0
    %72 = vmatpush1.msra.mxu0 %v54
    %73 = vmatprep.subr.mxu0 0.0
    %74 = vmatpush1.msra.mxu0 %v53
    %75 = vmatprep.subr.mxu0 0.0
    %76 = vmatpush1.msra.mxu0 %v52
    %77 = vmatprep.subr.mxu0 0.0
    %78 = vmatpush1.msra.mxu0 %v51
    %79 = vmatprep.subr.mxu0 0.0
    %80 = vmatpush1.msra.mxu0 %v50
    %81 = vmatprep.subr.mxu0 0.0
    %82 = vmatpush1.msra.mxu0 %v49
    %83 = vmatprep.subr.mxu0 0.0
    %84 = vmatpush1.msra.mxu0 %v48
    %85 = vmatprep.subr.mxu0 0.0
    %86 = vmatpush1.msra.mxu0 %v47
    %87 = vmatprep.subr.mxu0 0.0
    %88 = vmatpush1.msra.mxu0 %v46
    %89 = vmatprep.subr.mxu0 0.0
    %90 = vmatpush1.msra.mxu0 %v45
    %91 = vmatprep.subr.mxu0 0.0
    %92 = vmatpush1.msra.mxu0 %v44
    %93 = vmatprep.subr.mxu0 0.0
    %94 = vmatpush2.msra.mxu0 0.0
    %95 = vmatprep.subr.mxu0 0.0
    %96 = vmatpush2.msra.mxu0 0.0
    %97 = vmatprep.subr.mxu0 0.0
    %98 = vmatpush2.msra.mxu0 0.0
    %99 = vmatprep.subr.mxu0 0.0
    %100 = vmatpush2.msra.mxu0 0.0
    %101 = vmatprep.subr.mxu0 0.0
    %102 = vmatpush2.msra.mxu0 0.0
    %103 = vmatprep.subr.mxu0 0.0
    %104 = vmatpush2.msra.mxu0 0.0
    %105 = vmatprep.subr.mxu0 0.0
    %106 = vmatpush2.msra.mxu0 0.0
    %107 = vmatprep.subr.mxu0 0.0
    %108 = vmatpush2.msra.mxu0 0.0
    %109 = vmatprep.subr.mxu0 0.0
    %110 = vmatpush2.msra.mxu0 0.0
    %111 = vmatprep.subr.mxu0 0.0
    %112 = vmatpush2.msra.mxu0 0.0
    %113 = vmatprep.subr.mxu0 0.0
    %114 = vmatpush2.msra.mxu0 0.0
    %115 = vmatprep.subr.mxu0 0.0
    %116 = vmatpush2.msra.mxu0 0.0
    %117 = vmatprep.subr.mxu0 0.0
    %118 = vmatpush2.msra.mxu0 0.0
    %119 = vmatprep.subr.mxu0 0.0
    %120 = vmatpush2.msra.mxu0 0.0
    %121 = vmatprep.subr.mxu0 0.0
    %122 = vmatpush2.msra.mxu0 0.0
    %123 = vmatprep.subr.mxu0 0.0
    %124 = vmatpush2.msra.mxu0 0.0
    %125 = vmatprep.mubr.f32.mxu0 0.0
    %126 = vmatmul.mubr.f32.gmra.mxu0 %v43
    %v127 = vpop.f32.mrf.mxu0
    %v128 = vadd.f32 0.0, %v127
    %v129 = vpop.f32.mrf.mxu0
    %130 = vdwg.mxu0
    %v131 = vadd.f32 %v60, %v128
    %132 = vst [vmem:[#allocation7] sm:$0xff] %v131
    // Predicated region
    $region22: #{tpu_custom_call.1} parent=1 // pred_check
      _
    $region23: #{tpu_custom_call.1} parent=1 // pred_check_branch
      %134 = sbr.rel (0) target = $region25
    $region24: #{tpu_custom_call.1} parent=1 // pred_region
      %s136 = ssub.s32 128, 128
      %137 = vsyncadd [#allocation4], %s136
      %s139 = sshll.u32 [#allocation7], 4
      %s140 = int_to_ptr.vmem [resolvable:$true] %s139
      %142 = dma.vmem_to_hbm [thread:$0]  %s140, 128, %s2, [#allocation4]
    $region25: #{tpu_custom_call.1} parent=1 // pred_fallthru
      _
    // Predicated region
    $region26: #{tpu_custom_call.1} parent=1 // pred_check
      _
    $region27: #{tpu_custom_call.1} parent=1 // pred_check_branch
      %144 = sbr.rel (0) target = $region29
    $region28: #{tpu_custom_call.1} parent=1 // pred_region
      %145 = dma.done [#allocation4], 128
    $region29: #{tpu_custom_call.1} parent=1 // pred_fallthru
      _
    %146 = vsyncpa [#allocation3], 1
    %147 = vsyncpa [#allocation6], 1
    %148 = vsyncpa [#allocation4], 1

</llo_original>
